<compile_context>
chip_gen: v7x
topology: tpu7x:2x2x1
jax: 0.10.0
libtpu: 0.0.40
codegen_flags: <defaults>
</compile_context>

<pallas_src>
import functools

import jax
import jax.numpy as jnp
import numpy as np
from jax.experimental import pallas as pl
from jax.experimental.pallas import tpu as pltpu

BN_EPS = 1e-5


def _round_up(x, m):
    return (x + m - 1) // m * m


def _make_kernel(n_heads):
    """Fused multi-head MLP + weighted combine + final linear + sigmoid."""

    def kernel(*refs):
        in_refs, out_ref = refs[:-1], refs[-1]
        bf_ref = in_refs[-1]                       # (1, 1) final bias
        acc = jnp.zeros(out_ref.shape, jnp.float32)
        for h in range(n_heads):                   # unrolled; each head's params differ
            x_ref, w1_ref, b1_ref, w2_ref, b2_ref, wf_ref = in_refs[6 * h:6 * h + 6]
            a = jnp.dot(x_ref[...], w1_ref[...],
                        preferred_element_type=jnp.float32) + b1_ref[...]
            a = jnp.maximum(a, 0.0)                # Linear+BN folded -> bias+ReLU
            a = jnp.dot(a, w2_ref[...],
                        preferred_element_type=jnp.float32) + b2_ref[...]
            a = jnp.maximum(a, 0.0)
            # head weight folded into wf: contributes head_weight[h]*a @ final_w
            acc = acc + jnp.dot(a, wf_ref[...], preferred_element_type=jnp.float32)
        logit = acc + bf_ref[...]
        out_ref[...] = (1.0 / (1.0 + jnp.exp(-logit))).astype(out_ref.dtype)

    return kernel


@functools.partial(jax.jit, static_argnames=("tb",))
def multi_head_wide_deep_forward(x_idx, kparams, *, tb=256):
    """x_idx: int32 (batch, num_fields). kparams: output of fold_and_pad_params."""
    offsets = kparams["offsets"]
    B, F = x_idx.shape
    flat_idx = (x_idx + offsets[None, :]).reshape(-1)

    TB = min(tb, _round_up(B, 8))      # batch tile (multiple of 8 sublanes)
    Bp = _round_up(B, TB)

    ins, in_specs = [], []
    for hp in kparams["heads"]:
        table = hp["embedding"]
        E = table.shape[1]
        D0 = F * E
        # TODO(synk): embedding gather still runs in XLA; a true in-kernel DMA
        # gather would remove this HBM round trip.
        ex = jnp.take(table, flat_idx, axis=0).reshape(B, D0)
        if Bp != B:
            ex = jnp.pad(ex, ((0, Bp - B), (0, 0)))
        H1p = hp["w1"].shape[1]
        H2p = hp["w2"].shape[1]
        ins += [ex, hp["w1"], hp["b1"], hp["w2"], hp["b2"], hp["wf"]]
        in_specs += [
            pl.BlockSpec((TB, D0), lambda i: (i, 0)),    # streamed per batch tile
            pl.BlockSpec((D0, H1p), lambda i: (0, 0)),   # weights: resident in VMEM
            pl.BlockSpec((1, H1p), lambda i: (0, 0)),
            pl.BlockSpec((H1p, H2p), lambda i: (0, 0)),
            pl.BlockSpec((1, H2p), lambda i: (0, 0)),
            pl.BlockSpec((H2p, 1), lambda i: (0, 0)),
        ]
    ins.append(kparams["final_b"])
    in_specs.append(pl.BlockSpec((1, 1), lambda i: (0, 0)))

    out = pl.pallas_call(
        _make_kernel(len(kparams["heads"])),
        out_shape=jax.ShapeDtypeStruct((Bp, 1), jnp.float32),
        grid=(Bp // TB,),
        in_specs=in_specs,
        out_specs=pl.BlockSpec((TB, 1), lambda i: (i, 0)),
        compiler_params=pltpu.CompilerParams(dimension_semantics=("parallel",)),
    )(*ins)
    return out[:B, 0]


def fold_and_pad_params(params):
    """Fold BN + head weights into linear weights, zero-pad hidden dims to 128."""
    folded = {"offsets": params["offsets"], "final_b": params["final_b"], "heads": []}
    for hidx, hp in enumerate(params["heads"]):
        s1 = hp["bn1_gamma"] * jax.lax.rsqrt(hp["bn1_var"] + BN_EPS)
        w1 = hp["w1"] * s1
        b1 = (hp["b1"] - hp["bn1_mean"]) * s1 + hp["bn1_beta"]
        s2 = hp["bn2_gamma"] * jax.lax.rsqrt(hp["bn2_var"] + BN_EPS)
        w2 = hp["w2"] * s2
        b2 = (hp["b2"] - hp["bn2_mean"]) * s2 + hp["bn2_beta"]
        wf = params["head_weights"][hidx] * params["final_w"]          # (H2, 1)

        h1, h2 = w2.shape
        h1p, h2p = _round_up(h1, 128), _round_up(h2, 128)
        folded["heads"].append({
            "embedding": hp["embedding"],
            "w1": jnp.pad(w1, ((0, 0), (0, h1p - h1))),
            "b1": jnp.pad(b1, ((0, 0), (0, h1p - h1))),
            "w2": jnp.pad(w2, ((0, h1p - h1), (0, h2p - h2))),
            "b2": jnp.pad(b2, ((0, 0), (0, h2p - h2))),
            "wf": jnp.pad(wf, ((0, h2p - h2), (0, 0))),
        })
    return folded


def reference_forward(x_idx, params):
    """Pure-JAX reference with the original (unfolded) module semantics."""
    offsets = params["offsets"]
    B, F = x_idx.shape
    flat_idx = (x_idx + offsets[None, :]).reshape(-1)
    head_outs = []
    for hp in params["heads"]:
        E = hp["embedding"].shape[1]
        a = jnp.take(hp["embedding"], flat_idx, axis=0).reshape(B, F * E)
        for i in (1, 2):
            w, b = hp[f"w{i}"], hp[f"b{i}"]
            g, be = hp[f"bn{i}_gamma"], hp[f"bn{i}_beta"]
            m, v = hp[f"bn{i}_mean"], hp[f"bn{i}_var"]
            a = a @ w + b
            a = (a - m) * (g / jnp.sqrt(v + BN_EPS)) + be
            a = jnp.maximum(a, 0.0)
        head_outs.append(a)
    stacked = jnp.stack(head_outs, axis=-1)                       # (B, H2, n_heads)
    combined = jnp.sum(stacked * params["head_weights"][None, None, :], axis=-1)
    logit = combined @ params["final_w"] + params["final_b"]      # (B, 1)
    return jax.nn.sigmoid(logit[:, 0])


def make_params(key, field_dims, embed_dims, mlp_dims):
    num_fields = len(field_dims)
    vocab = int(np.sum(field_dims))
    offsets = jnp.asarray(np.concatenate(([0], np.cumsum(field_dims)[:-1])), jnp.int32)
    assert len(mlp_dims) == 2, "kernel written for the 2-layer MLP used by this model"
    h1, h2 = mlp_dims

    heads = []
    for hidx, e in enumerate(embed_dims):
        ks = jax.random.split(jax.random.fold_in(key, hidx), 10)
        d0 = num_fields * e
        heads.append({
            "embedding": 0.1 * jax.random.normal(ks[0], (vocab, e), jnp.float32),
            "w1": 0.1 * jax.random.normal(ks[1], (d0, h1), jnp.float32),
            "b1": 0.01 * jax.random.normal(ks[2], (1, h1), jnp.float32),
            "bn1_gamma": 1.0 + 0.1 * jax.random.normal(ks[3], (1, h1), jnp.float32),
            "bn1_beta": 0.05 * jax.random.normal(ks[4], (1, h1), jnp.float32),
            "bn1_mean": 0.02 * jax.random.normal(ks[5], (1, h1), jnp.float32),
            "bn1_var": jax.random.uniform(ks[6], (1, h1), jnp.float32, 0.5, 1.5),
            "w2": 0.1 * jax.random.normal(ks[7], (h1, h2), jnp.float32),
            "b2": 0.01 * jax.random.normal(ks[8], (1, h2), jnp.float32),
            "bn2_gamma": 1.0 + 0.1 * jax.random.normal(ks[9], (1, h2), jnp.float32),
            "bn2_beta": jnp.full((1, h2), -0.03, jnp.float32),
            "bn2_mean": jnp.full((1, h2), 0.01, jnp.float32),
            "bn2_var": jnp.full((1, h2), 1.05, jnp.float32),
        })

    kw, kb = jax.random.split(jax.random.fold_in(key, 1000))
    return {
        "offsets": offsets,
        "heads": heads,
        "head_weights": jnp.asarray([1.0 + 0.1 * i for i in range(len(embed_dims))],
                                    jnp.float32),
        "final_w": 0.1 * jax.random.normal(kw, (h2, 1), jnp.float32),
        "final_b": 0.01 * jax.random.normal(kb, (1, 1), jnp.float32),
    }


if __name__ == "__main__":
    field_dims = (11, 7, 5, 3)     # num_fields = 4
    embed_dims = (16, 8)           # two heads
    mlp_dims = (64, 32)
    batch = 8

    key = jax.random.PRNGKey(0)
    k_params, k_idx = jax.random.split(key)
    params = make_params(k_params, field_dims, embed_dims, mlp_dims)
    kparams = fold_and_pad_params(params)

    # deterministic example input: per-field index within that field's cardinality
    cols = [jax.random.randint(jax.random.fold_in(k_idx, i), (batch,), 0, d, jnp.int32)
            for i, d in enumerate(field_dims)]
    x_idx = jnp.stack(cols, axis=1)    # (batch, num_fields) int32

    out = multi_head_wide_deep_forward(x_idx, kparams)
    out = jax.block_until_ready(out)

    ref = reference_forward(x_idx, params)
    assert out.shape == (batch,)
    np.testing.assert_allclose(np.asarray(out), np.asarray(ref), rtol=1e-5, atol=1e-5)

    print("KERNEL_OK")
</pallas_src>

<mosaic_0001>
module attributes {stable_mosaic.version = 11 : i64} {
  func.func @kernel(%arg0: i32, %arg1: memref<8x64xf32, #tpu.memory_space<vmem>>, %arg2: memref<64x128xf32, #tpu.memory_space<vmem>>, %arg3: memref<1x128xf32, #tpu.memory_space<vmem>>, %arg4: memref<128x128xf32, #tpu.memory_space<vmem>>, %arg5: memref<1x128xf32, #tpu.memory_space<vmem>>, %arg6: memref<128x1xf32, #tpu.memory_space<vmem>>, %arg7: memref<8x32xf32, #tpu.memory_space<vmem>>, %arg8: memref<32x128xf32, #tpu.memory_space<vmem>>, %arg9: memref<1x128xf32, #tpu.memory_space<vmem>>, %arg10: memref<128x128xf32, #tpu.memory_space<vmem>>, %arg11: memref<1x128xf32, #tpu.memory_space<vmem>>, %arg12: memref<128x1xf32, #tpu.memory_space<vmem>>, %arg13: memref<1x1xf32, #tpu.memory_space<vmem>>, %arg14: memref<8x1xf32, #tpu.memory_space<vmem>>) attributes {dimension_semantics = [#tpu.dimension_semantics<parallel>], iteration_bounds = array<i64: 1>, scalar_prefetch = 0 : i64, scratch_operands = 0 : i64, tpu.core_type = #tpu.core_type<tc>, window_params = [{transform_indices = @transform_0, window_bounds = array<i64: 8, 64>}, {pipeline_mode = #tpu.pipeline_mode<synchronous>, transform_indices = @transform_1, window_bounds = array<i64: 64, 128>}, {pipeline_mode = #tpu.pipeline_mode<synchronous>, transform_indices = @transform_2, window_bounds = array<i64: 1, 128>}, {pipeline_mode = #tpu.pipeline_mode<synchronous>, transform_indices = @transform_3, window_bounds = array<i64: 128, 128>}, {pipeline_mode = #tpu.pipeline_mode<synchronous>, transform_indices = @transform_4, window_bounds = array<i64: 1, 128>}, {pipeline_mode = #tpu.pipeline_mode<synchronous>, transform_indices = @transform_5, window_bounds = array<i64: 128, 1>}, {transform_indices = @transform_6, window_bounds = array<i64: 8, 32>}, {pipeline_mode = #tpu.pipeline_mode<synchronous>, transform_indices = @transform_7, window_bounds = array<i64: 32, 128>}, {pipeline_mode = #tpu.pipeline_mode<synchronous>, transform_indices = @transform_8, window_bounds = array<i64: 1, 128>}, {pipeline_mode = #tpu.pipeline_mode<synchronous>, transform_indices = @transform_9, window_bounds = array<i64: 128, 128>}, {pipeline_mode = #tpu.pipeline_mode<synchronous>, transform_indices = @transform_10, window_bounds = array<i64: 1, 128>}, {pipeline_mode = #tpu.pipeline_mode<synchronous>, transform_indices = @transform_11, window_bounds = array<i64: 128, 1>}, {pipeline_mode = #tpu.pipeline_mode<synchronous>, transform_indices = @transform_12, window_bounds = array<i64: 1, 1>}, {transform_indices = @transform_13, window_bounds = array<i64: 8, 1>}]} {
    %cst = arith.constant 0.000000e+00 : f32
    %0 = vector.broadcast %cst : f32 to vector<8x1xf32>
    %c0 = arith.constant 0 : index
    %c0_0 = arith.constant 0 : index
    %1 = vector.load %arg1[%c0, %c0_0] : memref<8x64xf32, #tpu.memory_space<vmem>>, vector<8x64xf32>
    %c0_1 = arith.constant 0 : index
    %c0_2 = arith.constant 0 : index
    %2 = vector.load %arg2[%c0_1, %c0_2] : memref<64x128xf32, #tpu.memory_space<vmem>>, vector<64x128xf32>
    %cst_3 = arith.constant dense<0.000000e+00> : vector<8x128xf32>
    %3 = tpu.matmul %1, %2, %cst_3 {dimension_numbers = #tpu.dot_dimension_numbers<[1], [0], [0], [1], [0, 0, 1, 1], [], []>} : vector<8x64xf32>, vector<64x128xf32>, vector<8x128xf32> -> vector<8x128xf32>
    %c0_4 = arith.constant 0 : index
    %c0_5 = arith.constant 0 : index
    %4 = vector.load %arg3[%c0_4, %c0_5] : memref<1x128xf32, #tpu.memory_space<vmem>>, vector<1x128xf32>
    %5 = vector.broadcast %4 : vector<1x128xf32> to vector<8x128xf32>
    %6 = arith.addf %3, %5 : vector<8x128xf32>
    %cst_6 = arith.constant 0.000000e+00 : f32
    %7 = vector.broadcast %cst_6 : f32 to vector<8x128xf32>
    %8 = arith.maximumf %6, %7 : vector<8x128xf32>
    %c0_7 = arith.constant 0 : index
    %c0_8 = arith.constant 0 : index
    %9 = vector.load %arg4[%c0_7, %c0_8] : memref<128x128xf32, #tpu.memory_space<vmem>>, vector<128x128xf32>
    %cst_9 = arith.constant dense<0.000000e+00> : vector<8x128xf32>
    %10 = tpu.matmul %8, %9, %cst_9 {dimension_numbers = #tpu.dot_dimension_numbers<[1], [0], [0], [1], [0, 0, 1, 1], [], []>} : vector<8x128xf32>, vector<128x128xf32>, vector<8x128xf32> -> vector<8x128xf32>
    %c0_10 = arith.constant 0 : index
    %c0_11 = arith.constant 0 : index
    %11 = vector.load %arg5[%c0_10, %c0_11] : memref<1x128xf32, #tpu.memory_space<vmem>>, vector<1x128xf32>
    %12 = vector.broadcast %11 : vector<1x128xf32> to vector<8x128xf32>
    %13 = arith.addf %10, %12 : vector<8x128xf32>
    %cst_12 = arith.constant 0.000000e+00 : f32
    %14 = vector.broadcast %cst_12 : f32 to vector<8x128xf32>
    %15 = arith.maximumf %13, %14 : vector<8x128xf32>
    %c0_13 = arith.constant 0 : index
    %c0_14 = arith.constant 0 : index
    %16 = vector.load %arg6[%c0_13, %c0_14] : memref<128x1xf32, #tpu.memory_space<vmem>>, vector<128x1xf32>
    %cst_15 = arith.constant dense<0.000000e+00> : vector<8x1xf32>
    %17 = tpu.matmul %15, %16, %cst_15 {dimension_numbers = #tpu.dot_dimension_numbers<[1], [0], [0], [1], [0, 0, 1, 1], [], []>} : vector<8x128xf32>, vector<128x1xf32>, vector<8x1xf32> -> vector<8x1xf32>
    %18 = arith.addf %0, %17 : vector<8x1xf32>
    %c0_16 = arith.constant 0 : index
    %c0_17 = arith.constant 0 : index
    %19 = vector.load %arg7[%c0_16, %c0_17] : memref<8x32xf32, #tpu.memory_space<vmem>>, vector<8x32xf32>
    %c0_18 = arith.constant 0 : index
    %c0_19 = arith.constant 0 : index
    %20 = vector.load %arg8[%c0_18, %c0_19] : memref<32x128xf32, #tpu.memory_space<vmem>>, vector<32x128xf32>
    %cst_20 = arith.constant dense<0.000000e+00> : vector<8x128xf32>
    %21 = tpu.matmul %19, %20, %cst_20 {dimension_numbers = #tpu.dot_dimension_numbers<[1], [0], [0], [1], [0, 0, 1, 1], [], []>} : vector<8x32xf32>, vector<32x128xf32>, vector<8x128xf32> -> vector<8x128xf32>
    %c0_21 = arith.constant 0 : index
    %c0_22 = arith.constant 0 : index
    %22 = vector.load %arg9[%c0_21, %c0_22] : memref<1x128xf32, #tpu.memory_space<vmem>>, vector<1x128xf32>
    %23 = vector.broadcast %22 : vector<1x128xf32> to vector<8x128xf32>
    %24 = arith.addf %21, %23 : vector<8x128xf32>
    %cst_23 = arith.constant 0.000000e+00 : f32
    %25 = vector.broadcast %cst_23 : f32 to vector<8x128xf32>
    %26 = arith.maximumf %24, %25 : vector<8x128xf32>
    %c0_24 = arith.constant 0 : index
    %c0_25 = arith.constant 0 : index
    %27 = vector.load %arg10[%c0_24, %c0_25] : memref<128x128xf32, #tpu.memory_space<vmem>>, vector<128x128xf32>
    %cst_26 = arith.constant dense<0.000000e+00> : vector<8x128xf32>
    %28 = tpu.matmul %26, %27, %cst_26 {dimension_numbers = #tpu.dot_dimension_numbers<[1], [0], [0], [1], [0, 0, 1, 1], [], []>} : vector<8x128xf32>, vector<128x128xf32>, vector<8x128xf32> -> vector<8x128xf32>
    %c0_27 = arith.constant 0 : index
    %c0_28 = arith.constant 0 : index
    %29 = vector.load %arg11[%c0_27, %c0_28] : memref<1x128xf32, #tpu.memory_space<vmem>>, vector<1x128xf32>
    %30 = vector.broadcast %29 : vector<1x128xf32> to vector<8x128xf32>
    %31 = arith.addf %28, %30 : vector<8x128xf32>
    %cst_29 = arith.constant 0.000000e+00 : f32
    %32 = vector.broadcast %cst_29 : f32 to vector<8x128xf32>
    %33 = arith.maximumf %31, %32 : vector<8x128xf32>
    %c0_30 = arith.constant 0 : index
    %c0_31 = arith.constant 0 : index
    %34 = vector.load %arg12[%c0_30, %c0_31] : memref<128x1xf32, #tpu.memory_space<vmem>>, vector<128x1xf32>
    %cst_32 = arith.constant dense<0.000000e+00> : vector<8x1xf32>
    %35 = tpu.matmul %33, %34, %cst_32 {dimension_numbers = #tpu.dot_dimension_numbers<[1], [0], [0], [1], [0, 0, 1, 1], [], []>} : vector<8x128xf32>, vector<128x1xf32>, vector<8x1xf32> -> vector<8x1xf32>
    %36 = arith.addf %18, %35 : vector<8x1xf32>
    %c0_33 = arith.constant 0 : index
    %c0_34 = arith.constant 0 : index
    %37 = vector.load %arg13[%c0_33, %c0_34] : memref<1x1xf32, #tpu.memory_space<vmem>>, vector<1x1xf32>
    %38 = vector.broadcast %37 : vector<1x1xf32> to vector<8x1xf32>
    %39 = arith.addf %36, %38 : vector<8x1xf32>
    %cst_35 = arith.constant 0.000000e+00 : f32
    %40 = vector.broadcast %cst_35 : f32 to vector<8x1xf32>
    %41 = arith.subf %40, %39 : vector<8x1xf32>
    %42 = math.exp %41 : vector<8x1xf32>
    %cst_36 = arith.constant 1.000000e+00 : f32
    %43 = vector.broadcast %cst_36 : f32 to vector<8x1xf32>
    %44 = arith.addf %43, %42 : vector<8x1xf32>
    %cst_37 = arith.constant 1.000000e+00 : f32
    %45 = vector.broadcast %cst_37 : f32 to vector<8x1xf32>
    %46 = arith.divf %45, %44 : vector<8x1xf32>
    %c0_38 = arith.constant 0 : index
    %c0_39 = arith.constant 0 : index
    %47 = vector.load %arg14[%c0_38, %c0_39] : memref<8x1xf32, #tpu.memory_space<vmem>>, vector<8x1xf32>
    tpu.vector_store %arg14[%c0_38, %c0_39], %46 {strides = array<i32>} : memref<8x1xf32, #tpu.memory_space<vmem>>, vector<8x1xf32>,
    return
  }
  func.func @transform_0(%arg0: i32) -> (i32, i32) {
    %c0_i32 = arith.constant 0 : i32
    %c0_i32_0 = arith.constant 0 : i32
    return %arg0, %c0_i32 : i32, i32
  }
  func.func @transform_1(%arg0: i32) -> (i32, i32) {
    %c0_i32 = arith.constant 0 : i32
    %c0_i32_0 = arith.constant 0 : i32
    %c0_i32_1 = arith.constant 0 : i32
    return %c0_i32, %c0_i32_0 : i32, i32
  }
  func.func @transform_2(%arg0: i32) -> (i32, i32) {
    %c0_i32 = arith.constant 0 : i32
    %c0_i32_0 = arith.constant 0 : i32
    %c0_i32_1 = arith.constant 0 : i32
    return %c0_i32, %c0_i32_0 : i32, i32
  }
  func.func @transform_3(%arg0: i32) -> (i32, i32) {
    %c0_i32 = arith.constant 0 : i32
    %c0_i32_0 = arith.constant 0 : i32
    %c0_i32_1 = arith.constant 0 : i32
    return %c0_i32, %c0_i32_0 : i32, i32
  }
  func.func @transform_4(%arg0: i32) -> (i32, i32) {
    %c0_i32 = arith.constant 0 : i32
    %c0_i32_0 = arith.constant 0 : i32
    %c0_i32_1 = arith.constant 0 : i32
    return %c0_i32, %c0_i32_0 : i32, i32
  }
  func.func @transform_5(%arg0: i32) -> (i32, i32) {
    %c0_i32 = arith.constant 0 : i32
    %c0_i32_0 = arith.constant 0 : i32
    %c0_i32_1 = arith.constant 0 : i32
    return %c0_i32, %c0_i32_0 : i32, i32
  }
  func.func @transform_6(%arg0: i32) -> (i32, i32) {
    %c0_i32 = arith.constant 0 : i32
    %c0_i32_0 = arith.constant 0 : i32
    return %arg0, %c0_i32 : i32, i32
  }
  func.func @transform_7(%arg0: i32) -> (i32, i32) {
    %c0_i32 = arith.constant 0 : i32
    %c0_i32_0 = arith.constant 0 : i32
    %c0_i32_1 = arith.constant 0 : i32
    return %c0_i32, %c0_i32_0 : i32, i32
  }
  func.func @transform_8(%arg0: i32) -> (i32, i32) {
    %c0_i32 = arith.constant 0 : i32
    %c0_i32_0 = arith.constant 0 : i32
    %c0_i32_1 = arith.constant 0 : i32
    return %c0_i32, %c0_i32_0 : i32, i32
  }
  func.func @transform_9(%arg0: i32) -> (i32, i32) {
    %c0_i32 = arith.constant 0 : i32
    %c0_i32_0 = arith.constant 0 : i32
    %c0_i32_1 = arith.constant 0 : i32
    return %c0_i32, %c0_i32_0 : i32, i32
  }
  func.func @transform_10(%arg0: i32) -> (i32, i32) {
    %c0_i32 = arith.constant 0 : i32
    %c0_i32_0 = arith.constant 0 : i32
    %c0_i32_1 = arith.constant 0 : i32
    return %c0_i32, %c0_i32_0 : i32, i32
  }
  func.func @transform_11(%arg0: i32) -> (i32, i32) {
    %c0_i32 = arith.constant 0 : i32
    %c0_i32_0 = arith.constant 0 : i32
    %c0_i32_1 = arith.constant 0 : i32
    return %c0_i32, %c0_i32_0 : i32, i32
  }
  func.func @transform_12(%arg0: i32) -> (i32, i32) {
    %c0_i32 = arith.constant 0 : i32
    %c0_i32_0 = arith.constant 0 : i32
    %c0_i32_1 = arith.constant 0 : i32
    return %c0_i32, %c0_i32_0 : i32, i32
  }
  func.func @transform_13(%arg0: i32) -> (i32, i32) {
    %c0_i32 = arith.constant 0 : i32
    %c0_i32_0 = arith.constant 0 : i32
    return %arg0, %c0_i32 : i32, i32
  }
}

</mosaic_0001>

<llo_original>
// kernel: multi_head_wide_deep_forward.1
$region0: #{multi_head_wide_deep_forward.1}
  #allocation0 [shape = 'u32[]', space=smem, size = 0x4, offset = 0x4, fixed_abs, tag = 'smem constant byte address 0x4 - core index']
  #allocation1 [shape = 'u32[144,128]{1,0:T(1,128)}', space=vmem, size = 0x12000, scoped, tag = 'internal scratch']
  #allocation2 [shape = 'f32[1,1]{1,0:T(1,128)S(1)}', space=vmem, size = 0x200, scoped, tag = 'scoped memory for multi_head_wide_deep_forward.1']
  %s0 = inlined_call_operand.vmem [shape: f32[8,64], index: 0, kind: input, shape index: {}]
  %s1 = inlined_call_operand.vmem [shape: f32[64,128], index: 1, kind: input, shape index: {}]
  %s2 = inlined_call_operand.vmem [shape: f32[1,128], index: 2, kind: input, shape index: {}]
  %s3 = inlined_call_operand.vmem [shape: f32[128,128], index: 3, kind: input, shape index: {}]
  %s4 = inlined_call_operand.vmem [shape: f32[1,128], index: 4, kind: input, shape index: {}]
  %s5 = inlined_call_operand.vmem [shape: f32[128,1], index: 5, kind: input, shape index: {}]
  %s6 = inlined_call_operand.vmem [shape: f32[8,32], index: 6, kind: input, shape index: {}]
  %s7 = inlined_call_operand.vmem [shape: f32[32,128], index: 7, kind: input, shape index: {}]
  %s8 = inlined_call_operand.vmem [shape: f32[1,128], index: 8, kind: input, shape index: {}]
  %s9 = inlined_call_operand.vmem [shape: f32[128,128], index: 9, kind: input, shape index: {}]
  %s10 = inlined_call_operand.vmem [shape: f32[1,128], index: 10, kind: input, shape index: {}]
  %s11 = inlined_call_operand.vmem [shape: f32[128,1], index: 11, kind: input, shape index: {}]
  %s12 = inlined_call_operand.<no memory space> [shape: f32[1,1], index: 12, kind: input, shape index: {}]
  %s13 = inlined_call_operand.vmem [shape: f32[8,1], index: 13, kind: output, shape index: {}]
  %s14 = sld [smem:[#allocation0]]
  $region62: #{multi_head_wide_deep_forward.1} parent=0
    _
  %s16 = ssub.s32 1, %s14
  %s17 = scalar_select 0, %s16, %s14
  %v18 = vstv %s12
  %19 = vst [vmem:[#allocation2] sm:$0x1] %v18
  // Predicated region
  $region2: #{multi_head_wide_deep_forward.1} parent=0 // pred_check
    _
  $region3: #{multi_head_wide_deep_forward.1} parent=0 // pred_check_branch
    %21 = sbr.rel (0) target = $region5
  $region4: #{multi_head_wide_deep_forward.1} parent=0 // pred_region
    _
  $region5: #{multi_head_wide_deep_forward.1} parent=0 // pred_fallthru
    _
  // Predicated region
  $region6: #{multi_head_wide_deep_forward.1} parent=0 // pred_check
    _
  $region7: #{multi_head_wide_deep_forward.1} parent=0 // pred_check_branch
    %23 = sbr.rel (0) target = $region9
  $region8: #{multi_head_wide_deep_forward.1} parent=0 // pred_region
    _
  $region9: #{multi_head_wide_deep_forward.1} parent=0 // pred_fallthru
    _
  // Predicated region
  $region10: #{multi_head_wide_deep_forward.1} parent=0 // pred_check
    _
  $region11: #{multi_head_wide_deep_forward.1} parent=0 // pred_check_branch
    %25 = sbr.rel (0) target = $region13
  $region12: #{multi_head_wide_deep_forward.1} parent=0 // pred_region
    _
  $region13: #{multi_head_wide_deep_forward.1} parent=0 // pred_fallthru
    _
  // Predicated region
  $region14: #{multi_head_wide_deep_forward.1} parent=0 // pred_check
    _
  $region15: #{multi_head_wide_deep_forward.1} parent=0 // pred_check_branch
    %27 = sbr.rel (0) target = $region17
  $region16: #{multi_head_wide_deep_forward.1} parent=0 // pred_region
    _
  $region17: #{multi_head_wide_deep_forward.1} parent=0 // pred_fallthru
    _
  // Predicated region
  $region18: #{multi_head_wide_deep_forward.1} parent=0 // pred_check
    _
  $region19: #{multi_head_wide_deep_forward.1} parent=0 // pred_check_branch
    %29 = sbr.rel (0) target = $region21
  $region20: #{multi_head_wide_deep_forward.1} parent=0 // pred_region
    _
  $region21: #{multi_head_wide_deep_forward.1} parent=0 // pred_fallthru
    _
  // Predicated region
  $region22: #{multi_head_wide_deep_forward.1} parent=0 // pred_check
    _
  $region23: #{multi_head_wide_deep_forward.1} parent=0 // pred_check_branch
    %31 = sbr.rel (0) target = $region25
  $region24: #{multi_head_wide_deep_forward.1} parent=0 // pred_region
    _
  $region25: #{multi_head_wide_deep_forward.1} parent=0 // pred_fallthru
    _
  // Predicated region
  $region26: #{multi_head_wide_deep_forward.1} parent=0 // pred_check
    _
  $region27: #{multi_head_wide_deep_forward.1} parent=0 // pred_check_branch
    %33 = sbr.rel (0) target = $region29
  $region28: #{multi_head_wide_deep_forward.1} parent=0 // pred_region
    _
  $region29: #{multi_head_wide_deep_forward.1} parent=0 // pred_fallthru
    _
  // Predicated region
  $region30: #{multi_head_wide_deep_forward.1} parent=0 // pred_check
    _
  $region31: #{multi_head_wide_deep_forward.1} parent=0 // pred_check_branch
    %35 = sbr.rel (0) target = $region33
  $region32: #{multi_head_wide_deep_forward.1} parent=0 // pred_region
    _
  $region33: #{multi_head_wide_deep_forward.1} parent=0 // pred_fallthru
    _
  // Predicated region
  $region34: #{multi_head_wide_deep_forward.1} parent=0 // pred_check
    _
  $region35: #{multi_head_wide_deep_forward.1} parent=0 // pred_check_branch
    %37 = sbr.rel (0) target = $region37
  $region36: #{multi_head_wide_deep_forward.1} parent=0 // pred_region
    _
  $region37: #{multi_head_wide_deep_forward.1} parent=0 // pred_fallthru
    _
  // Predicated region
  $region38: #{multi_head_wide_deep_forward.1} parent=0 // pred_check
    _
  $region39: #{multi_head_wide_deep_forward.1} parent=0 // pred_check_branch
    %39 = sbr.rel (0) target = $region41
  $region40: #{multi_head_wide_deep_forward.1} parent=0 // pred_region
    _
  $region41: #{multi_head_wide_deep_forward.1} parent=0 // pred_fallthru
    _
  // Predicated region
  $region42: #{multi_head_wide_deep_forward.1} parent=0 // pred_check
    _
  $region43: #{multi_head_wide_deep_forward.1} parent=0 // pred_check_branch
    %41 = sbr.rel (0) target = $region45
  $region44: #{multi_head_wide_deep_forward.1} parent=0 // pred_region
    _
  $region45: #{multi_head_wide_deep_forward.1} parent=0 // pred_fallthru
    _
  // Predicated region
  $region46: #{multi_head_wide_deep_forward.1} parent=0 // pred_check
    _
  $region47: #{multi_head_wide_deep_forward.1} parent=0 // pred_check_branch
    %43 = sbr.rel (0) target = $region49
  $region48: #{multi_head_wide_deep_forward.1} parent=0 // pred_region
    _
  $region49: #{multi_head_wide_deep_forward.1} parent=0 // pred_fallthru
    _
  // Predicated region
  $region50: #{multi_head_wide_deep_forward.1} parent=0 // pred_check
    _
  $region51: #{multi_head_wide_deep_forward.1} parent=0 // pred_check_branch
    %45 = sbr.rel (0) target = $region53
  $region52: #{multi_head_wide_deep_forward.1} parent=0 // pred_region
    _
  $region53: #{multi_head_wide_deep_forward.1} parent=0 // pred_fallthru
    _
  %v46 = vld [vmem:[%s0] sm:$0xff]
  %v47 = vld [vmem:[%s1] sm:$0xff]
  %v48 = vld [vmem:[%s1 + $0x8] sm:$0xff]
  %v49 = vld [vmem:[%s1 + $0x10] sm:$0xff]
  %v50 = vld [vmem:[%s1 + $0x18] sm:$0xff]
  %v51 = vld [vmem:[%s1 + $0x20] sm:$0xff]
  %v52 = vld [vmem:[%s1 + $0x28] sm:$0xff]
  %v53 = vld [vmem:[%s1 + $0x30] sm:$0xff]
  %v54 = vld [vmem:[%s1 + $0x38] sm:$0xff]
  %v55 = vld [vmem:[%s2] sm:$0x1]
  %v57 = vlaneseq
  %v58 = vshrl.u32 %v57, 7
  %v59 = vsub.s32 0, %v58
  %v60 = vrot.slane %v55, %v59
  %vm62 = vcmask 523264
  %v64 = vsel %vm62, %v46, 0
  %66 = vmatprep.subr.mxu0 0.0
  %67 = vmatpush1.msra.mxu0 %v47
  %68 = vmatprep.subr.mxu0 0.0
  %69 = vmatpush1.msra.mxu0 %v48
  %70 = vmatprep.subr.mxu0 0.0
  %71 = vmatpush1.msra.mxu0 %v49
  %72 = vmatprep.subr.mxu0 0.0
  %73 = vmatpush1.msra.mxu0 %v50
  %74 = vmatprep.subr.mxu0 0.0
  %75 = vmatpush1.msra.mxu0 %v51
  %76 = vmatprep.subr.mxu0 0.0
  %77 = vmatpush1.msra.mxu0 %v52
  %78 = vmatprep.subr.mxu0 0.0
  %79 = vmatpush1.msra.mxu0 %v53
  %80 = vmatprep.subr.mxu0 0.0
  %81 = vmatpush1.msra.mxu0 %v54
  %82 = vmatprep.subr.mxu0 0.0
  %83 = vmatpush1.msra.mxu0 0.0
  %84 = vmatprep.subr.mxu0 0.0
  %85 = vmatpush1.msra.mxu0 0.0
  %86 = vmatprep.subr.mxu0 0.0
  %87 = vmatpush1.msra.mxu0 0.0
  %88 = vmatprep.subr.mxu0 0.0
  %89 = vmatpush1.msra.mxu0 0.0
  %90 = vmatprep.subr.mxu0 0.0
  %91 = vmatpush1.msra.mxu0 0.0
  %92 = vmatprep.subr.mxu0 0.0
  %93 = vmatpush1.msra.mxu0 0.0
  %94 = vmatprep.subr.mxu0 0.0
  %95 = vmatpush1.msra.mxu0 0.0
  %96 = vmatprep.subr.mxu0 0.0
  %97 = vmatpush1.msra.mxu0 0.0
  %98 = vmatprep.subr.mxu0 0.0
  %99 = vmatpush1.msra.mxu0 0.0
  %100 = vmatprep.subr.mxu0 0.0
  %101 = vmatpush1.msra.mxu0 0.0
  %102 = vmatprep.subr.mxu0 0.0
  %103 = vmatpush1.msra.mxu0 0.0
  %104 = vmatprep.subr.mxu0 0.0
  %105 = vmatpush1.msra.mxu0 0.0
  %106 = vmatprep.subr.mxu0 0.0
  %107 = vmatpush1.msra.mxu0 0.0
  %108 = vmatprep.subr.mxu0 0.0
  %109 = vmatpush1.msra.mxu0 0.0
  %110 = vmatprep.subr.mxu0 0.0
  %111 = vmatpush1.msra.mxu0 0.0
  %112 = vmatprep.subr.mxu0 0.0
  %113 = vmatpush1.msra.mxu0 0.0
  %114 = vmatprep.subr.mxu0 0.0
  %115 = vmatpush1.msra.mxu0 0.0
  %116 = vmatprep.subr.mxu0 0.0
  %117 = vmatpush1.msra.mxu0 0.0
  %118 = vmatprep.subr.mxu0 0.0
  %119 = vmatpush1.msra.mxu0 0.0
  %120 = vmatprep.subr.mxu0 0.0
  %121 = vmatpush1.msra.mxu0 0.0
  %122 = vmatprep.subr.mxu0 0.0
  %123 = vmatpush1.msra.mxu0 0.0
  %124 = vmatprep.subr.mxu0 0.0
  %125 = vmatpush1.msra.mxu0 0.0
  %126 = vmatprep.subr.mxu0 0.0
  %127 = vmatpush1.msra.mxu0 0.0
  %128 = vmatprep.subr.mxu0 0.0
  %129 = vmatpush1.msra.mxu0 0.0
  %130 = vmatprep.mubr.f32.mxu0 0.0
  %131 = vmatmul.mubr.f32.gmra.mrb[0].mxu0 %v64
  %v132 = vpop.f32.mrb[0].mxu0
  %v133 = vadd.f32 %v60, %v132
  %v134 = vpop.f32.mrb[0].mxu0
  %135 = vdwg.mxu0
  %v136 = vmax.f32 %v133, 0.0
  %v137 = vld [vmem:[%s3] sm:$0xff]
  %v138 = vld [vmem:[%s3 + $0x8] sm:$0xff]
  %v139 = vld [vmem:[%s3 + $0x10] sm:$0xff]
  %v140 = vld [vmem:[%s3 + $0x18] sm:$0xff]
  %v141 = vld [vmem:[%s3 + $0x20] sm:$0xff]
  %v142 = vld [vmem:[%s3 + $0x28] sm:$0xff]
  %v143 = vld [vmem:[%s3 + $0x30] sm:$0xff]
  %v144 = vld [vmem:[%s3 + $0x38] sm:$0xff]
  %v145 = vld [vmem:[%s3 + $0x40] sm:$0xff]
  %v146 = vld [vmem:[%s3 + $0x48] sm:$0xff]
  %v147 = vld [vmem:[%s3 + $0x50] sm:$0xff]
  %v148 = vld [vmem:[%s3 + $0x58] sm:$0xff]
  %v149 = vld [vmem:[%s3 + $0x60] sm:$0xff]
  %v150 = vld [vmem:[%s3 + $0x68] sm:$0xff]
  %v151 = vld [vmem:[%s3 + $0x70] sm:$0xff]
  %v152 = vld [vmem:[%s3 + $0x78] sm:$0xff]
  %v153 = vld [vmem:[%s4] sm:$0x1]
  %v155 = vlaneseq
  %v156 = vshrl.u32 %v155, 7
  %v157 = vsub.s32 0, %v156
  %v158 = vrot.slane %v153, %v157
  %160 = vmatprep.subr.mxu0 0.0
  %161 = vmatpush1.msra.mxu0 %v137
  %162 = vmatprep.subr.mxu0 0.0
  %163 = vmatpush1.msra.mxu0 %v138
  %164 = vmatprep.subr.mxu0 0.0
  %165 = vmatpush1.msra.mxu0 %v139
  %166 = vmatprep.subr.mxu0 0.0
  %167 = vmatpush1.msra.mxu0 %v140
  %168 = vmatprep.subr.mxu0 0.0
  %169 = vmatpush1.msra.mxu0 %v141
  %170 = vmatprep.subr.mxu0 0.0
  %171 = vmatpush1.msra.mxu0 %v142
  %172 = vmatprep.subr.mxu0 0.0
  %173 = vmatpush1.msra.mxu0 %v143
  %174 = vmatprep.subr.mxu0 0.0
  %175 = vmatpush1.msra.mxu0 %v144
  %176 = vmatprep.subr.mxu0 0.0
  %177 = vmatpush1.msra.mxu0 %v145
  %178 = vmatprep.subr.mxu0 0.0
  %179 = vmatpush1.msra.mxu0 %v146
  %180 = vmatprep.subr.mxu0 0.0
  %181 = vmatpush1.msra.mxu0 %v147
  %182 = vmatprep.subr.mxu0 0.0
  %183 = vmatpush1.msra.mxu0 %v148
  %184 = vmatprep.subr.mxu0 0.0
  %185 = vmatpush1.msra.mxu0 %v149
  %186 = vmatprep.subr.mxu0 0.0
  %187 = vmatpush1.msra.mxu0 %v150
  %188 = vmatprep.subr.mxu0 0.0
  %189 = vmatpush1.msra.mxu0 %v151
  %190 = vmatprep.subr.mxu0 0.0
  %191 = vmatpush1.msra.mxu0 %v152
  %192 = vmatprep.subr.mxu0 0.0
  %193 = vmatpush1.msra.mxu0 0.0
  %194 = vmatprep.subr.mxu0 0.0
  %195 = vmatpush1.msra.mxu0 0.0
  %196 = vmatprep.subr.mxu0 0.0
  %197 = vmatpush1.msra.mxu0 0.0
  %198 = vmatprep.subr.mxu0 0.0
  %199 = vmatpush1.msra.mxu0 0.0
  %200 = vmatprep.subr.mxu0 0.0
  %201 = vmatpush1.msra.mxu0 0.0
  %202 = vmatprep.subr.mxu0 0.0
  %203 = vmatpush1.msra.mxu0 0.0
  %204 = vmatprep.subr.mxu0 0.0
  %205 = vmatpush1.msra.mxu0 0.0
  %206 = vmatprep.subr.mxu0 0.0
  %207 = vmatpush1.msra.mxu0 0.0
  %208 = vmatprep.subr.mxu0 0.0
  %209 = vmatpush1.msra.mxu0 0.0
  %210 = vmatprep.subr.mxu0 0.0
  %211 = vmatpush1.msra.mxu0 0.0
  %212 = vmatprep.subr.mxu0 0.0
  %213 = vmatpush1.msra.mxu0 0.0
  %214 = vmatprep.subr.mxu0 0.0
  %215 = vmatpush1.msra.mxu0 0.0
  %216 = vmatprep.subr.mxu0 0.0
  %217 = vmatpush1.msra.mxu0 0.0
  %218 = vmatprep.subr.mxu0 0.0
  %219 = vmatpush1.msra.mxu0 0.0
  %220 = vmatprep.subr.mxu0 0.0
  %221 = vmatpush1.msra.mxu0 0.0
  %222 = vmatprep.subr.mxu0 0.0
  %223 = vmatpush1.msra.mxu0 0.0
  %224 = vmatprep.mubr.f32.mxu0 0.0
  %225 = vmatmul.mubr.f32.gmra.mrb[0].mxu0 %v136
  %v226 = vpop.f32.mrb[0].mxu0
  %v227 = vadd.f32 %v158, %v226
  %v228 = vpop.f32.mrb[0].mxu0
  %229 = vdwg.mxu0
  %v230 = vmax.f32 %v227, 0.0
  %v231 = vld [vmem:[%s5] sm:$0xff]
  %v232 = vld [vmem:[%s5 + $0x8] sm:$0xff]
  %v233 = vld [vmem:[%s5 + $0x10] sm:$0xff]
  %v234 = vld [vmem:[%s5 + $0x18] sm:$0xff]
  %v235 = vld [vmem:[%s5 + $0x20] sm:$0xff]
  %v236 = vld [vmem:[%s5 + $0x28] sm:$0xff]
  %v237 = vld [vmem:[%s5 + $0x30] sm:$0xff]
  %v238 = vld [vmem:[%s5 + $0x38] sm:$0xff]
  %v239 = vld [vmem:[%s5 + $0x40] sm:$0xff]
  %v240 = vld [vmem:[%s5 + $0x48] sm:$0xff]
  %v241 = vld [vmem:[%s5 + $0x50] sm:$0xff]
  %v242 = vld [vmem:[%s5 + $0x58] sm:$0xff]
  %v243 = vld [vmem:[%s5 + $0x60] sm:$0xff]
  %v244 = vld [vmem:[%s5 + $0x68] sm:$0xff]
  %v245 = vld [vmem:[%s5 + $0x70] sm:$0xff]
  %v246 = vld [vmem:[%s5 + $0x78] sm:$0xff]
  %v247 = vld [vmem:[%s6] sm:$0xff]
  %v248 = vld [vmem:[%s7] sm:$0xff]
  %v249 = vld [vmem:[%s7 + $0x8] sm:$0xff]
  %v250 = vld [vmem:[%s7 + $0x10] sm:$0xff]
  %v251 = vld [vmem:[%s7 + $0x18] sm:$0xff]
  %v252 = vld [vmem:[%s8] sm:$0x1]
  %v254 = vlaneseq
  %v255 = vshrl.u32 %v254, 7
  %v256 = vsub.s32 0, %v255
  %v257 = vrot.slane %v252, %v256
  %vm259 = vcmask 261120
  %v261 = vsel %vm259, %v247, 0
  %263 = vmatprep.subr.mxu0 0.0
  %264 = vmatpush1.msra.mxu0 %v248
  %265 = vmatprep.subr.mxu0 0.0
  %266 = vmatpush1.msra.mxu0 %v249
  %267 = vmatprep.subr.mxu0 0.0
  %268 = vmatpush1.msra.mxu0 %v250
  %269 = vmatprep.subr.mxu0 0.0
  %270 = vmatpush1.msra.mxu0 %v251
  %271 = vmatprep.subr.mxu0 0.0
  %272 = vmatpush1.msra.mxu0 0.0
  %273 = vmatprep.subr.mxu0 0.0
  %274 = vmatpush1.msra.mxu0 0.0
  %275 = vmatprep.subr.mxu0 0.0
  %276 = vmatpush1.msra.mxu0 0.0
  %277 = vmatprep.subr.mxu0 0.0
  %278 = vmatpush1.msra.mxu0 0.0
  %279 = vmatprep.subr.mxu0 0.0
  %280 = vmatpush1.msra.mxu0 0.0
  %281 = vmatprep.subr.mxu0 0.0
  %282 = vmatpush1.msra.mxu0 0.0
  %283 = vmatprep.subr.mxu0 0.0
  %284 = vmatpush1.msra.mxu0 0.0
  %285 = vmatprep.subr.mxu0 0.0
  %286 = vmatpush1.msra.mxu0 0.0
  %287 = vmatprep.subr.mxu0 0.0
  %288 = vmatpush1.msra.mxu0 0.0
  %289 = vmatprep.subr.mxu0 0.0
  %290 = vmatpush1.msra.mxu0 0.0
  %291 = vmatprep.subr.mxu0 0.0
  %292 = vmatpush1.msra.mxu0 0.0
  %293 = vmatprep.subr.mxu0 0.0
  %294 = vmatpush1.msra.mxu0 0.0
  %295 = vmatprep.subr.mxu0 0.0
  %296 = vmatpush1.msra.mxu0 0.0
  %297 = vmatprep.subr.mxu0 0.0
  %298 = vmatpush1.msra.mxu0 0.0
  %299 = vmatprep.subr.mxu0 0.0
  %300 = vmatpush1.msra.mxu0 0.0
  %301 = vmatprep.subr.mxu0 0.0
  %302 = vmatpush1.msra.mxu0 0.0
  %303 = vmatprep.subr.mxu0 0.0
  %304 = vmatpush1.msra.mxu0 0.0
  %305 = vmatprep.subr.mxu0 0.0
  %306 = vmatpush1.msra.mxu0 0.0
  %307 = vmatprep.subr.mxu0 0.0
  %308 = vmatpush1.msra.mxu0 0.0
  %309 = vmatprep.subr.mxu0 0.0
  %310 = vmatpush1.msra.mxu0 0.0
  %311 = vmatprep.subr.mxu0 0.0
  %312 = vmatpush1.msra.mxu0 0.0
  %313 = vmatprep.subr.mxu0 0.0
  %314 = vmatpush1.msra.mxu0 0.0
  %315 = vmatprep.subr.mxu0 0.0
  %316 = vmatpush1.msra.mxu0 0.0
  %317 = vmatprep.subr.mxu0 0.0
  %318 = vmatpush1.msra.mxu0 0.0
  %319 = vmatprep.subr.mxu0 0.0
  %320 = vmatpush1.msra.mxu0 0.0
  %321 = vmatprep.subr.mxu0 0.0
  %322 = vmatpush1.msra.mxu0 0.0
  %323 = vmatprep.subr.mxu0 0.0
  %324 = vmatpush1.msra.mxu0 0.0
  %325 = vmatprep.subr.mxu0 0.0
  %326 = vmatpush1.msra.mxu0 0.0
  %327 = vmatprep.mubr.f32.mxu0 0.0
  %328 = vmatmul.mubr.f32.gmra.mrb[0].mxu0 %v261
  %v329 = vpop.f32.mrb[0].mxu0
  %v330 = vadd.f32 %v257, %v329
  %v331 = vpop.f32.mrb[0].mxu0
  %332 = vdwg.mxu0
  %v333 = vmax.f32 %v330, 0.0
  %v334 = vld [vmem:[%s9] sm:$0xff]
  %v335 = vld [vmem:[%s9 + $0x8] sm:$0xff]
  %v336 = vld [vmem:[%s9 + $0x10] sm:$0xff]
  %v337 = vld [vmem:[%s9 + $0x18] sm:$0xff]
  %v338 = vld [vmem:[%s9 + $0x20] sm:$0xff]
  %v339 = vld [vmem:[%s9 + $0x28] sm:$0xff]
  %v340 = vld [vmem:[%s9 + $0x30] sm:$0xff]
  %v341 = vld [vmem:[%s9 + $0x38] sm:$0xff]
  %v342 = vld [vmem:[%s9 + $0x40] sm:$0xff]
  %v343 = vld [vmem:[%s9 + $0x48] sm:$0xff]
  %v344 = vld [vmem:[%s9 + $0x50] sm:$0xff]
  %v345 = vld [vmem:[%s9 + $0x58] sm:$0xff]
  %v346 = vld [vmem:[%s9 + $0x60] sm:$0xff]
  %v347 = vld [vmem:[%s9 + $0x68] sm:$0xff]
  %v348 = vld [vmem:[%s9 + $0x70] sm:$0xff]
  %v349 = vld [vmem:[%s9 + $0x78] sm:$0xff]
  %v350 = vld [vmem:[%s10] sm:$0x1]
  %v352 = vlaneseq
  %v353 = vshrl.u32 %v352, 7
  %v354 = vsub.s32 0, %v353
  %v355 = vrot.slane %v350, %v354
  %357 = vmatprep.subr.mxu0 0.0
  %358 = vmatpush1.msra.mxu0 %v334
  %359 = vmatprep.subr.mxu0 0.0
  %360 = vmatpush1.msra.mxu0 %v335
  %361 = vmatprep.subr.mxu0 0.0
  %362 = vmatpush1.msra.mxu0 %v336
  %363 = vmatprep.subr.mxu0 0.0
  %364 = vmatpush1.msra.mxu0 %v337
  %365 = vmatprep.subr.mxu0 0.0
  %366 = vmatpush1.msra.mxu0 %v338
  %367 = vmatprep.subr.mxu0 0.0
  %368 = vmatpush1.msra.mxu0 %v339
  %369 = vmatprep.subr.mxu0 0.0
  %370 = vmatpush1.msra.mxu0 %v340
  %371 = vmatprep.subr.mxu0 0.0
  %372 = vmatpush1.msra.mxu0 %v341
  %373 = vmatprep.subr.mxu0 0.0
  %374 = vmatpush1.msra.mxu0 %v342
  %375 = vmatprep.subr.mxu0 0.0
  %376 = vmatpush1.msra.mxu0 %v343
  %377 = vmatprep.subr.mxu0 0.0
  %378 = vmatpush1.msra.mxu0 %v344
  %379 = vmatprep.subr.mxu0 0.0
  %380 = vmatpush1.msra.mxu0 %v345
  %381 = vmatprep.subr.mxu0 0.0
  %382 = vmatpush1.msra.mxu0 %v346
  %383 = vmatprep.subr.mxu0 0.0
  %384 = vmatpush1.msra.mxu0 %v347
  %385 = vmatprep.subr.mxu0 0.0
  %386 = vmatpush1.msra.mxu0 %v348
  %387 = vmatprep.subr.mxu0 0.0
  %388 = vmatpush1.msra.mxu0 %v349
  %389 = vmatprep.subr.mxu0 0.0
  %390 = vmatpush1.msra.mxu0 0.0
  %391 = vmatprep.subr.mxu0 0.0
  %392 = vmatpush1.msra.mxu0 0.0
  %393 = vmatprep.subr.mxu0 0.0
  %394 = vmatpush1.msra.mxu0 0.0
  %395 = vmatprep.subr.mxu0 0.0
  %396 = vmatpush1.msra.mxu0 0.0
  %397 = vmatprep.subr.mxu0 0.0
  %398 = vmatpush1.msra.mxu0 0.0
  %399 = vmatprep.subr.mxu0 0.0
  %400 = vmatpush1.msra.mxu0 0.0
  %401 = vmatprep.subr.mxu0 0.0
  %402 = vmatpush1.msra.mxu0 0.0
  %403 = vmatprep.subr.mxu0 0.0
  %404 = vmatpush1.msra.mxu0 0.0
  %405 = vmatprep.subr.mxu0 0.0
  %406 = vmatpush1.msra.mxu0 0.0
  %407 = vmatprep.subr.mxu0 0.0
  %408 = vmatpush1.msra.mxu0 0.0
  %409 = vmatprep.subr.mxu0 0.0
  %410 = vmatpush1.msra.mxu0 0.0
  %411 = vmatprep.subr.mxu0 0.0
  %412 = vmatpush1.msra.mxu0 0.0
  %413 = vmatprep.subr.mxu0 0.0
  %414 = vmatpush1.msra.mxu0 0.0
  %415 = vmatprep.subr.mxu0 0.0
  %416 = vmatpush1.msra.mxu0 0.0
  %417 = vmatprep.subr.mxu0 0.0
  %418 = vmatpush1.msra.mxu0 0.0
  %419 = vmatprep.subr.mxu0 0.0
  %420 = vmatpush1.msra.mxu0 0.0
  %421 = vmatprep.mubr.f32.mxu0 0.0
  %422 = vmatmul.mubr.f32.gmra.mrb[0].mxu0 %v333
  %v423 = vpop.f32.mrb[0].mxu0
  %v424 = vadd.f32 %v355, %v423
  %v425 = vpop.f32.mrb[0].mxu0
  %426 = vdwg.mxu0
  %v427 = vmax.f32 %v424, 0.0
  %v428 = vld [vmem:[%s11] sm:$0xff]
  %v429 = vld [vmem:[%s11 + $0x8] sm:$0xff]
  %v430 = vld [vmem:[%s11 + $0x10] sm:$0xff]
  %v431 = vld [vmem:[%s11 + $0x18] sm:$0xff]
  %v432 = vld [vmem:[%s11 + $0x20] sm:$0xff]
  %v433 = vld [vmem:[%s11 + $0x28] sm:$0xff]
  %v434 = vld [vmem:[%s11 + $0x30] sm:$0xff]
  %v435 = vld [vmem:[%s11 + $0x38] sm:$0xff]
  %v436 = vld [vmem:[%s11 + $0x40] sm:$0xff]
  %v437 = vld [vmem:[%s11 + $0x48] sm:$0xff]
  %v438 = vld [vmem:[%s11 + $0x50] sm:$0xff]
  %v439 = vld [vmem:[%s11 + $0x58] sm:$0xff]
  %v440 = vld [vmem:[%s11 + $0x60] sm:$0xff]
  %v441 = vld [vmem:[%s11 + $0x68] sm:$0xff]
  %v442 = vld [vmem:[%s11 + $0x70] sm:$0xff]
  %v443 = vld [vmem:[%s11 + $0x78] sm:$0xff]
  %444 = vmatprep.subr.mxu0 0.0
  %445 = vmatpush1.msra.mxu0 %v428
  %446 = vmatprep.subr.mxu0 0.0
  %447 = vmatpush1.msra.mxu0 %v429
  %448 = vmatprep.subr.mxu0 0.0
  %449 = vmatpush1.msra.mxu0 %v430
  %450 = vmatprep.subr.mxu0 0.0
  %451 = vmatpush1.msra.mxu0 %v431
  %452 = vmatprep.subr.mxu0 0.0
  %453 = vmatpush1.msra.mxu0 %v432
  %454 = vmatprep.subr.mxu0 0.0
  %455 = vmatpush1.msra.mxu0 %v433
  %456 = vmatprep.subr.mxu0 0.0
  %457 = vmatpush1.msra.mxu0 %v434
  %458 = vmatprep.subr.mxu0 0.0
  %459 = vmatpush1.msra.mxu0 %v435
  %460 = vmatprep.subr.mxu0 0.0
  %461 = vmatpush1.msra.mxu0 %v436
  %462 = vmatprep.subr.mxu0 0.0
  %463 = vmatpush1.msra.mxu0 %v437
  %464 = vmatprep.subr.mxu0 0.0
  %465 = vmatpush1.msra.mxu0 %v438
  %466 = vmatprep.subr.mxu0 0.0
  %467 = vmatpush1.msra.mxu0 %v439
  %468 = vmatprep.subr.mxu0 0.0
  %469 = vmatpush1.msra.mxu0 %v440
  %470 = vmatprep.subr.mxu0 0.0
  %471 = vmatpush1.msra.mxu0 %v441
  %472 = vmatprep.subr.mxu0 0.0
  %473 = vmatpush1.msra.mxu0 %v442
  %474 = vmatprep.subr.mxu0 0.0
  %475 = vmatpush1.msra.mxu0 %v443
  %476 = vmatprep.subr.mxu0 0.0
  %477 = vmatpush1.msra.mxu0 0.0
  %478 = vmatprep.subr.mxu0 0.0
  %479 = vmatpush1.msra.mxu0 0.0
  %480 = vmatprep.subr.mxu0 0.0
  %481 = vmatpush1.msra.mxu0 0.0
  %482 = vmatprep.subr.mxu0 0.0
  %483 = vmatpush1.msra.mxu0 0.0
  %484 = vmatprep.subr.mxu0 0.0
  %485 = vmatpush1.msra.mxu0 0.0
  %486 = vmatprep.subr.mxu0 0.0
  %487 = vmatpush1.msra.mxu0 0.0
  %488 = vmatprep.subr.mxu0 0.0
  %489 = vmatpush1.msra.mxu0 0.0
  %490 = vmatprep.subr.mxu0 0.0
  %491 = vmatpush1.msra.mxu0 0.0
  %492 = vmatprep.subr.mxu0 0.0
  %493 = vmatpush1.msra.mxu0 0.0
  %494 = vmatprep.subr.mxu0 0.0
  %495 = vmatpush1.msra.mxu0 0.0
  %496 = vmatprep.subr.mxu0 0.0
  %497 = vmatpush1.msra.mxu0 0.0
  %498 = vmatprep.subr.mxu0 0.0
  %499 = vmatpush1.msra.mxu0 0.0
  %500 = vmatprep.subr.mxu0 0.0
  %501 = vmatpush1.msra.mxu0 0.0
  %502 = vmatprep.subr.mxu0 0.0
  %503 = vmatpush1.msra.mxu0 0.0
  %504 = vmatprep.subr.mxu0 0.0
  %505 = vmatpush1.msra.mxu0 0.0
  %506 = vmatprep.subr.mxu0 0.0
  %507 = vmatpush1.msra.mxu0 0.0
  %508 = vmatprep.mubr.f32.mxu0 0.0
  %509 = vmatmul.mubr.f32.gmra.mrb[0].mxu0 %v427
  %v510 = vpop.f32.mrb[0].mxu0
  %v511 = vadd.f32 0.0, %v510
  %v512 = vpop.f32.mrb[0].mxu0
  %513 = vdwg.mxu0
  %514 = vmatprep.subr.mxu0 0.0
  %515 = vmatpush1.msra.mxu0 %v231
  %516 = vmatprep.subr.mxu0 0.0
  %517 = vmatpush1.msra.mxu0 %v232
  %518 = vmatprep.subr.mxu0 0.0
  %519 = vmatpush1.msra.mxu0 %v233
  %520 = vmatprep.subr.mxu0 0.0
  %521 = vmatpush1.msra.mxu0 %v234
  %522 = vmatprep.subr.mxu0 0.0
  %523 = vmatpush1.msra.mxu0 %v235
  %524 = vmatprep.subr.mxu0 0.0
  %525 = vmatpush1.msra.mxu0 %v236
  %526 = vmatprep.subr.mxu0 0.0
  %527 = vmatpush1.msra.mxu0 %v237
  %528 = vmatprep.subr.mxu0 0.0
  %529 = vmatpush1.msra.mxu0 %v238
  %530 = vmatprep.subr.mxu0 0.0
  %531 = vmatpush1.msra.mxu0 %v239
  %532 = vmatprep.subr.mxu0 0.0
  %533 = vmatpush1.msra.mxu0 %v240
  %534 = vmatprep.subr.mxu0 0.0
  %535 = vmatpush1.msra.mxu0 %v241
  %536 = vmatprep.subr.mxu0 0.0
  %537 = vmatpush1.msra.mxu0 %v242
  %538 = vmatprep.subr.mxu0 0.0
  %539 = vmatpush1.msra.mxu0 %v243
  %540 = vmatprep.subr.mxu0 0.0
  %541 = vmatpush1.msra.mxu0 %v244
  %542 = vmatprep.subr.mxu0 0.0
  %543 = vmatpush1.msra.mxu0 %v245
  %544 = vmatprep.subr.mxu0 0.0
  %545 = vmatpush1.msra.mxu0 %v246
  %546 = vmatprep.subr.mxu0 0.0
  %547 = vmatpush1.msra.mxu0 0.0
  %548 = vmatprep.subr.mxu0 0.0
  %549 = vmatpush1.msra.mxu0 0.0
  %550 = vmatprep.subr.mxu0 0.0
  %551 = vmatpush1.msra.mxu0 0.0
  %552 = vmatprep.subr.mxu0 0.0
  %553 = vmatpush1.msra.mxu0 0.0
  %554 = vmatprep.subr.mxu0 0.0
  %555 = vmatpush1.msra.mxu0 0.0
  %556 = vmatprep.subr.mxu0 0.0
  %557 = vmatpush1.msra.mxu0 0.0
  %558 = vmatprep.subr.mxu0 0.0
  %559 = vmatpush1.msra.mxu0 0.0
  %560 = vmatprep.subr.mxu0 0.0
  %561 = vmatpush1.msra.mxu0 0.0
  %562 = vmatprep.subr.mxu0 0.0
  %563 = vmatpush1.msra.mxu0 0.0
  %564 = vmatprep.subr.mxu0 0.0
  %565 = vmatpush1.msra.mxu0 0.0
  %566 = vmatprep.subr.mxu0 0.0
  %567 = vmatpush1.msra.mxu0 0.0
  %568 = vmatprep.subr.mxu0 0.0
  %569 = vmatpush1.msra.mxu0 0.0
  %570 = vmatprep.subr.mxu0 0.0
  %571 = vmatpush1.msra.mxu0 0.0
  %572 = vmatprep.subr.mxu0 0.0
  %573 = vmatpush1.msra.mxu0 0.0
  %574 = vmatprep.subr.mxu0 0.0
  %575 = vmatpush1.msra.mxu0 0.0
  %576 = vmatprep.subr.mxu0 0.0
  %577 = vmatpush1.msra.mxu0 0.0
  %578 = vmatprep.mubr.f32.mxu0 0.0
  %579 = vmatmul.mubr.f32.gmra.mrb[0].mxu0 %v230
  %v580 = vpop.f32.mrb[0].mxu0
  %v581 = vadd.f32 %v511, %v580
  %v582 = vpop.f32.mrb[0].mxu0
  %583 = vdwg.mxu0
  %v584 = vld [vmem:[#allocation2] sm:$0x1]
  %v586 = vlaneseq
  %v587 = vshrl.u32 %v586, 7
  %v588 = vsub.s32 0, %v587
  %v589 = vrot.slane %v584, %v588
  %v591 = vadd.f32 %v581, %v589
  %v592 = vsub.f32 0.0, %v591
  %v593 = vmul.f32 %v592, 1.442695
  %v594 = vpow.pop %v593
  %v595 = vadd.f32 %v594, 1.0
  %v596 = vrcp.pop %v595
  %v597 = vmul.f32 1.0, %v596
  %vm598 = vcmask 7168
  %599 = vst.msk [vmem:[%s13] sm:$0xff] %vm598, %v597
  // Predicated region
  $region54: #{multi_head_wide_deep_forward.1} parent=0 // pred_check
    _
  $region55: #{multi_head_wide_deep_forward.1} parent=0 // pred_check_branch
    %601 = sbr.rel (0) target = $region57
  $region56: #{multi_head_wide_deep_forward.1} parent=0 // pred_region
    _
  $region57: #{multi_head_wide_deep_forward.1} parent=0 // pred_fallthru
    _
  // Predicated region
  $region58: #{multi_head_wide_deep_forward.1} parent=0 // pred_check
    _
  $region59: #{multi_head_wide_deep_forward.1} parent=0 // pred_check_branch
    %603 = sbr.rel (0) target = $region61
  $region60: #{multi_head_wide_deep_forward.1} parent=0 // pred_region
    _
  $region61: #{multi_head_wide_deep_forward.1} parent=0 // pred_fallthru
    _

</llo_original>
